<compile_context>
chip_gen: v6e
topology: v6e:2x2x1
jax: 0.10.0
libtpu: 0.0.40
codegen_flags: <defaults>
</compile_context>

<pallas_src>
import functools

import jax
import jax.numpy as jnp
from jax.experimental import pallas as pl
from jax.experimental.pallas import tpu as pltpu


# ---------------------------------------------------------------------------
# Kernels
# ---------------------------------------------------------------------------
def _residual_linear_kernel(x_ref, w_ref, b_ref, out_ref, o_ref):
    """o = out + (x @ w + b)   x:(tm,in) w:(in,out) b:(1,out) out:(tm,out)."""
    proj = jnp.dot(x_ref[...], w_ref[...], preferred_element_type=jnp.float32)
    proj = proj + b_ref[...].astype(jnp.float32)  # (1, out) broadcasts over rows
    o_ref[...] = (out_ref[...].astype(jnp.float32) + proj).astype(o_ref.dtype)


def _residual_add_kernel(x_ref, out_ref, o_ref):
    """o = out + x (in_dim == out_dim path)."""
    o_ref[...] = out_ref[...] + x_ref[...]


# ---------------------------------------------------------------------------
# Helpers
# ---------------------------------------------------------------------------
def _round_up(x: int, mult: int) -> int:
    return ((x + mult - 1) // mult) * mult


def _choose_row_tile(m: int, in_dim: int, out_dim: int,
                     bytes_per_elem: int = 4,
                     vmem_budget_bytes: int = 8 << 20) -> int:
    """Pick a row tile: multiple of 8, double-buffered footprint under budget."""
    # Per row, per pipeline stage (double-buffered): x + out + result tiles.
    per_row = 2 * (in_dim + 2 * out_dim) * bytes_per_elem
    tm = max(8, min(1024, vmem_budget_bytes // max(per_row, 1)))
    tm = (tm // 8) * 8
    # Never tile larger than the (8-aligned) problem itself.
    tm = min(tm, _round_up(m, 8))
    return max(8, tm)


# ---------------------------------------------------------------------------
# Wrapper
# ---------------------------------------------------------------------------
class ResidualConnection:
    """JAX/Pallas port of the PyTorch ResidualConnection module."""

    def __init__(self, in_dimensions: int, out_dimensions: int, key=None,
                 use_bf16_matmul: bool = False):
        self.in_dimensions = in_dimensions
        self.out_dimensions = out_dimensions
        self.use_bf16_matmul = use_bf16_matmul
        if in_dimensions != out_dimensions:
            if key is None:
                key = jax.random.PRNGKey(0)
            kw, kb = jax.random.split(key)
            # nn.Linear init: U(-1/sqrt(in), 1/sqrt(in)) for weight and bias.
            bound = 1.0 / (in_dimensions ** 0.5)
            # torch weight is (out, in); keep kernel-friendly (in, out) transpose.
            self.weight_t = jax.random.uniform(
                kw, (in_dimensions, out_dimensions), jnp.float32, -bound, bound
            )
            self.bias = jax.random.uniform(
                kb, (1, out_dimensions), jnp.float32, -bound, bound
            )
        else:
            self.weight_t = None
            self.bias = None

    @functools.partial(jax.jit, static_argnums=0)
    def __call__(self, X, output):
        lead_shape = X.shape[:-1]
        m = 1
        for d in lead_shape:
            m *= d
        x2d = X.reshape(m, self.in_dimensions)
        out2d = output.reshape(m, self.out_dimensions)

        # --- row tiling over the flattened batch*seq dimension -------------
        tm = _choose_row_tile(m, self.in_dimensions, self.out_dimensions)
        m_pad = _round_up(m, tm)
        if m_pad != m:
            x2d = jnp.pad(x2d, ((0, m_pad - m), (0, 0)))
            out2d = jnp.pad(out2d, ((0, m_pad - m), (0, 0)))
        grid = (m_pad // tm,)

        compiler_params = pltpu.CompilerParams(
            dimension_semantics=("parallel",),  # shard row tiles across TCs (v7x)
        )

        if self.weight_t is None:
            res = pl.pallas_call(
                _residual_add_kernel,
                out_shape=jax.ShapeDtypeStruct((m_pad, self.out_dimensions),
                                               output.dtype),
                grid_spec=pltpu.PrefetchScalarGridSpec(
                    num_scalar_prefetch=0,
                    grid=grid,
                    in_specs=[
                        pl.BlockSpec((tm, self.in_dimensions), lambda i: (i, 0)),
                        pl.BlockSpec((tm, self.out_dimensions), lambda i: (i, 0)),
                    ],
                    out_specs=pl.BlockSpec(
                        (tm, self.out_dimensions), lambda i: (i, 0)
                    ),
                ),
                compiler_params=compiler_params,
            )(x2d, out2d)
        else:
            w = self.weight_t
            if self.use_bf16_matmul:
                # Optional: halve x/w HBM bytes; accumulation stays f32.
                x2d = x2d.astype(jnp.bfloat16)
                w = w.astype(jnp.bfloat16)
            res = pl.pallas_call(
                _residual_linear_kernel,
                out_shape=jax.ShapeDtypeStruct((m_pad, self.out_dimensions),
                                               output.dtype),
                grid_spec=pltpu.PrefetchScalarGridSpec(
                    num_scalar_prefetch=0,
                    grid=grid,
                    in_specs=[
                        # x tile marches down the rows with the grid.
                        pl.BlockSpec((tm, self.in_dimensions), lambda i: (i, 0)),
                        # weight / bias: constant index_map -> VMEM-resident.
                        pl.BlockSpec(
                            (self.in_dimensions, self.out_dimensions),
                            lambda i: (0, 0),
                        ),
                        pl.BlockSpec((1, self.out_dimensions), lambda i: (0, 0)),
                        # layer output tile (residual add operand).
                        pl.BlockSpec((tm, self.out_dimensions), lambda i: (i, 0)),
                    ],
                    out_specs=pl.BlockSpec(
                        (tm, self.out_dimensions), lambda i: (i, 0)
                    ),
                ),
                compiler_params=compiler_params,
            )(x2d, w, self.bias, out2d)

        if m_pad != m:
            res = res[:m]
        return res.reshape(*lead_shape, self.out_dimensions)


# ---------------------------------------------------------------------------
# Demo / correctness check
# ---------------------------------------------------------------------------
if __name__ == "__main__":
    key = jax.random.PRNGKey(0)
    k1, k2, k3, k4, kparam = jax.random.split(key, 5)

    batch, seq = 2, 8
    in_dim, out_dim = 32, 16

    # --- case 1: in_dim != out_dim (downsample Linear + add) ---------------
    X = jax.random.normal(k1, (batch, seq, in_dim), jnp.float32)
    layer_out = jax.random.normal(k2, (batch, seq, out_dim), jnp.float32)

    mod = ResidualConnection(in_dim, out_dim, key=kparam)
    res = jax.block_until_ready(mod(X, layer_out))

    ref = layer_out + (X @ mod.weight_t + mod.bias.reshape(-1))
    assert res.shape == (batch, seq, out_dim)
    assert jnp.allclose(res, ref, atol=1e-5, rtol=1e-5)

    # --- case 2: in_dim == out_dim (plain add) -----------------------------
    X2 = jax.random.normal(k3, (batch, seq, out_dim), jnp.float32)
    out2 = jax.random.normal(k4, (batch, seq, out_dim), jnp.float32)

    mod_same = ResidualConnection(out_dim, out_dim)
    res2 = jax.block_until_ready(mod_same(X2, out2))
    assert jnp.allclose(res2, X2 + out2, atol=1e-6)

    print("KERNEL_OK")
</pallas_src>

<mosaic_0001>
module attributes {stable_mosaic.version = 11 : i64} {
  func.func @_residual_linear_kernel(%arg0: i32, %arg1: memref<16x32xf32, #tpu.memory_space<vmem>>, %arg2: memref<32x16xf32, #tpu.memory_space<vmem>>, %arg3: memref<1x16xf32, #tpu.memory_space<vmem>>, %arg4: memref<16x16xf32, #tpu.memory_space<vmem>>, %arg5: memref<16x16xf32, #tpu.memory_space<vmem>>) attributes {dimension_semantics = [#tpu.dimension_semantics<parallel>], iteration_bounds = array<i64: 1>, scalar_prefetch = 0 : i64, scratch_operands = 0 : i64, tpu.core_type = #tpu.core_type<tc>, window_params = [{transform_indices = @transform_0, window_bounds = array<i64: 16, 32>}, {pipeline_mode = #tpu.pipeline_mode<synchronous>, transform_indices = @transform_1, window_bounds = array<i64: 32, 16>}, {pipeline_mode = #tpu.pipeline_mode<synchronous>, transform_indices = @transform_2, window_bounds = array<i64: 1, 16>}, {transform_indices = @transform_3, window_bounds = array<i64: 16, 16>}, {transform_indices = @transform_4, window_bounds = array<i64: 16, 16>}]} {
    %c0 = arith.constant 0 : index
    %c0_0 = arith.constant 0 : index
    %0 = vector.load %arg1[%c0, %c0_0] : memref<16x32xf32, #tpu.memory_space<vmem>>, vector<16x32xf32>
    %c0_1 = arith.constant 0 : index
    %c0_2 = arith.constant 0 : index
    %1 = vector.load %arg2[%c0_1, %c0_2] : memref<32x16xf32, #tpu.memory_space<vmem>>, vector<32x16xf32>
    %cst = arith.constant dense<0.000000e+00> : vector<16x16xf32>
    %2 = tpu.matmul %0, %1, %cst {dimension_numbers = #tpu.dot_dimension_numbers<[1], [0], [0], [1], [0, 0, 1, 1], [], []>} : vector<16x32xf32>, vector<32x16xf32>, vector<16x16xf32> -> vector<16x16xf32>
    %c0_3 = arith.constant 0 : index
    %c0_4 = arith.constant 0 : index
    %3 = vector.load %arg3[%c0_3, %c0_4] : memref<1x16xf32, #tpu.memory_space<vmem>>, vector<1x16xf32>
    %4 = vector.broadcast %3 : vector<1x16xf32> to vector<16x16xf32>
    %5 = arith.addf %2, %4 : vector<16x16xf32>
    %c0_5 = arith.constant 0 : index
    %c0_6 = arith.constant 0 : index
    %6 = vector.load %arg4[%c0_5, %c0_6] : memref<16x16xf32, #tpu.memory_space<vmem>>, vector<16x16xf32>
    %7 = arith.addf %6, %5 : vector<16x16xf32>
    %c0_7 = arith.constant 0 : index
    %c0_8 = arith.constant 0 : index
    %8 = vector.load %arg5[%c0_7, %c0_8] : memref<16x16xf32, #tpu.memory_space<vmem>>, vector<16x16xf32>
    tpu.vector_store %arg5[%c0_7, %c0_8], %7 {strides = array<i32>} : memref<16x16xf32, #tpu.memory_space<vmem>>, vector<16x16xf32>,
    return
  }
  func.func @transform_0(%arg0: i32) -> (i32, i32) {
    %c0_i32 = arith.constant 0 : i32
    %c0_i32_0 = arith.constant 0 : i32
    return %arg0, %c0_i32 : i32, i32
  }
  func.func @transform_1(%arg0: i32) -> (i32, i32) {
    %c0_i32 = arith.constant 0 : i32
    %c0_i32_0 = arith.constant 0 : i32
    %c0_i32_1 = arith.constant 0 : i32
    return %c0_i32, %c0_i32_0 : i32, i32
  }
  func.func @transform_2(%arg0: i32) -> (i32, i32) {
    %c0_i32 = arith.constant 0 : i32
    %c0_i32_0 = arith.constant 0 : i32
    %c0_i32_1 = arith.constant 0 : i32
    return %c0_i32, %c0_i32_0 : i32, i32
  }
  func.func @transform_3(%arg0: i32) -> (i32, i32) {
    %c0_i32 = arith.constant 0 : i32
    %c0_i32_0 = arith.constant 0 : i32
    return %arg0, %c0_i32 : i32, i32
  }
  func.func @transform_4(%arg0: i32) -> (i32, i32) {
    %c0_i32 = arith.constant 0 : i32
    %c0_i32_0 = arith.constant 0 : i32
    return %arg0, %c0_i32 : i32, i32
  }
}

</mosaic_0001>

<llo_original>
// kernel: a_call__.1
$region0: #{a_call__.1}
  #allocation0 [shape = 'u32[]', space=smem, size = 0x4, offset = 0x4, fixed_abs, tag = 'smem constant byte address 0x4 - core index']
  #allocation1 [shape = 'u32[144,128]{1,0:T(1,128)}', space=vmem, size = 0x12000, scoped, tag = 'internal scratch']
  %s0 = inlined_call_operand.hbm [shape: f32[16,32], index: 0, kind: input, shape index: {}]
  %s1 = inlined_call_operand.hbm [shape: f32[32,16], index: 1, kind: input, shape index: {}]
  %s2 = inlined_call_operand.vmem [shape: f32[1,16], index: 2, kind: input, shape index: {}]
  %s3 = inlined_call_operand.hbm [shape: f32[16,16], index: 3, kind: input, shape index: {}]
  %s4 = inlined_call_operand.hbm [shape: f32[16,16], index: 4, kind: output, shape index: {}]
  %s5 = sld [smem:[#allocation0]]
  $region38: #{a_call__.1} parent=0
    _
  %s7 = ssub.s32 1, %s5
  %s8 = scalar_select 0, %s7, %s5
  $region1: #{a_call__.1} parent=0
    #allocation2 [shape = 'u8[8192]{0}', space=vmem, size = 0x2000, scoped, tag = 'input window, operand 0, single buffered']
    #allocation3 [shape = 's32[1]{0}', space=sflag, size = 0x4, scoped, tag = 'scoped memory for a_call__.1']
    #allocation4 [shape = 's32[1]{0}', space=sflag, size = 0x4, scoped, tag = 'scoped memory for a_call__.1']
    #allocation5 [shape = 'u8[16384]{0}', space=vmem, size = 0x4000, scoped, tag = 'input window, operand 1, single buffered']
    #allocation6 [shape = 's32[1]{0}', space=sflag, size = 0x4, scoped, tag = 'scoped memory for a_call__.1']
    #allocation7 [shape = 'u8[8192]{0}', space=vmem, size = 0x2000, scoped, tag = 'input window, operand 3, single buffered']
    #allocation8 [shape = 'u8[8192]{0}', space=vmem, size = 0x2000, scoped, tag = 'output window, operand 0, single buffered']
    %9 = vsyncpa [#allocation3], 0
    %10 = vsyncpa [#allocation6], 0
    %11 = vsyncpa [#allocation4], 0
    // Predicated region
    $region2: #{a_call__.1} parent=1 // pred_check
      _
    $region3: #{a_call__.1} parent=1 // pred_check_branch
      %13 = sbr.rel (0) target = $region5
    $region4: #{a_call__.1} parent=1 // pred_region
      %s15 = ssub.s32 256, 256
      %16 = vsyncadd [#allocation3], %s15
      %s17 = sshll.u32 [#allocation2], 4
      %s18 = int_to_ptr.vmem [resolvable:$true] %s17
      %23 = dma.hbm_to_vmem [thread:$0]  %s0, 256, %s18, [#allocation3], 128, 128, 8
    $region5: #{a_call__.1} parent=1 // pred_fallthru
      _
    // Predicated region
    $region6: #{a_call__.1} parent=1 // pred_check
      _
    $region7: #{a_call__.1} parent=1 // pred_check_branch
      %25 = sbr.rel (0) target = $region9
    $region8: #{a_call__.1} parent=1 // pred_region
      %s27 = ssub.s32 512, 512
      %28 = vsyncadd [#allocation6], %s27
      %s29 = sshll.u32 [#allocation5], 4
      %s30 = int_to_ptr.vmem [resolvable:$true] %s29
      %35 = dma.hbm_to_vmem [thread:$0]  %s1, 512, %s30, [#allocation6], 128, 128, 8
    $region9: #{a_call__.1} parent=1 // pred_fallthru
      _
    // Predicated region
    $region10: #{a_call__.1} parent=1 // pred_check
      _
    $region11: #{a_call__.1} parent=1 // pred_check_branch
      %37 = sbr.rel (0) target = $region13
    $region12: #{a_call__.1} parent=1 // pred_region
      _
    $region13: #{a_call__.1} parent=1 // pred_fallthru
      _
    // Predicated region
    $region14: #{a_call__.1} parent=1 // pred_check
      _
    $region15: #{a_call__.1} parent=1 // pred_check_branch
      %39 = sbr.rel (0) target = $region17
    $region16: #{a_call__.1} parent=1 // pred_region
      %s41 = ssub.s32 256, 256
      %42 = vsyncadd [#allocation6], %s41
      %s43 = sshll.u32 [#allocation7], 4
      %s44 = int_to_ptr.vmem [resolvable:$true] %s43
      %49 = dma.hbm_to_vmem [thread:$0]  %s3, 256, %s44, [#allocation6], 128, 128, 8
    $region17: #{a_call__.1} parent=1 // pred_fallthru
      _
    // Predicated region
    $region18: #{a_call__.1} parent=1 // pred_check
      _
    $region19: #{a_call__.1} parent=1 // pred_check_branch
      %51 = sbr.rel (0) target = $region21
    $region20: #{a_call__.1} parent=1 // pred_region
      %52 = dma.done [#allocation3], 256
    $region21: #{a_call__.1} parent=1 // pred_fallthru
      _
    // Predicated region
    $region22: #{a_call__.1} parent=1 // pred_check
      _
    $region23: #{a_call__.1} parent=1 // pred_check_branch
      %54 = sbr.rel (0) target = $region25
    $region24: #{a_call__.1} parent=1 // pred_region
      %55 = dma.done [#allocation6], 512
    $region25: #{a_call__.1} parent=1 // pred_fallthru
      _
    // Predicated region
    $region26: #{a_call__.1} parent=1 // pred_check
      _
    $region27: #{a_call__.1} parent=1 // pred_check_branch
      %57 = sbr.rel (0) target = $region29
    $region28: #{a_call__.1} parent=1 // pred_region
      %58 = dma.done [#allocation6], 256
    $region29: #{a_call__.1} parent=1 // pred_fallthru
      _
    %v59 = vld [vmem:[#allocation2] sm:$0xff]
    %v60 = vld [vmem:[#allocation2 + $0x8] sm:$0xff]
    %v61 = vld [vmem:[#allocation5] sm:$0xff]
    %v62 = vld [vmem:[#allocation5 + $0x8] sm:$0xff]
    %v63 = vld [vmem:[#allocation5 + $0x10] sm:$0xff]
    %v64 = vld [vmem:[#allocation5 + $0x18] sm:$0xff]
    %v65 = vld [vmem:[%s2] sm:$0x1]
    %v67 = vlaneseq
    %v68 = vshrl.u32 %v67, 7
    %v69 = vsub.s32 0, %v68
    %v70 = vrot.slane %v65, %v69
    %vm72 = vcmask 261120
    %v74 = vsel %vm72, %v59, 0
    %v77 = vsel %vm72, %v60, 0
    %79 = vmatprep.subr.mxu0 0.0
    %80 = vmatpush1.msra.mxu0 0.0
    %81 = vmatprep.subr.mxu0 0.0
    %82 = vmatpush1.msra.mxu0 0.0
    %83 = vmatprep.subr.mxu0 0.0
    %84 = vmatpush1.msra.mxu0 0.0
    %85 = vmatprep.subr.mxu0 0.0
    %86 = vmatpush1.msra.mxu0 0.0
    %87 = vmatprep.subr.mxu0 0.0
    %88 = vmatpush1.msra.mxu0 0.0
    %89 = vmatprep.subr.mxu0 0.0
    %90 = vmatpush1.msra.mxu0 0.0
    %91 = vmatprep.subr.mxu0 0.0
    %92 = vmatpush1.msra.mxu0 0.0
    %93 = vmatprep.subr.mxu0 0.0
    %94 = vmatpush1.msra.mxu0 0.0
    %95 = vmatprep.subr.mxu0 0.0
    %96 = vmatpush1.msra.mxu0 0.0
    %97 = vmatprep.subr.mxu0 0.0
    %98 = vmatpush1.msra.mxu0 0.0
    %99 = vmatprep.subr.mxu0 0.0
    %100 = vmatpush1.msra.mxu0 0.0
    %101 = vmatprep.subr.mxu0 0.0
    %102 = vmatpush1.msra.mxu0 0.0
    %103 = vmatprep.subr.mxu0 0.0
    %104 = vmatpush1.msra.mxu0 %v64
    %105 = vmatprep.subr.mxu0 0.0
    %106 = vmatpush1.msra.mxu0 %v63
    %107 = vmatprep.subr.mxu0 0.0
    %108 = vmatpush1.msra.mxu0 %v62
    %109 = vmatprep.subr.mxu0 0.0
    %110 = vmatpush1.msra.mxu0 %v61
    %111 = vmatprep.subr.mxu0 0.0
    %112 = vmatpush2.msra.mxu0 0.0
    %113 = vmatprep.subr.mxu0 0.0
    %114 = vmatpush2.msra.mxu0 0.0
    %115 = vmatprep.subr.mxu0 0.0
    %116 = vmatpush2.msra.mxu0 0.0
    %117 = vmatprep.subr.mxu0 0.0
    %118 = vmatpush2.msra.mxu0 0.0
    %119 = vmatprep.subr.mxu0 0.0
    %120 = vmatpush2.msra.mxu0 0.0
    %121 = vmatprep.subr.mxu0 0.0
    %122 = vmatpush2.msra.mxu0 0.0
    %123 = vmatprep.subr.mxu0 0.0
    %124 = vmatpush2.msra.mxu0 0.0
    %125 = vmatprep.subr.mxu0 0.0
    %126 = vmatpush2.msra.mxu0 0.0
    %127 = vmatprep.subr.mxu0 0.0
    %128 = vmatpush2.msra.mxu0 0.0
    %129 = vmatprep.subr.mxu0 0.0
    %130 = vmatpush2.msra.mxu0 0.0
    %131 = vmatprep.subr.mxu0 0.0
    %132 = vmatpush2.msra.mxu0 0.0
    %133 = vmatprep.subr.mxu0 0.0
    %134 = vmatpush2.msra.mxu0 0.0
    %135 = vmatprep.subr.mxu0 0.0
    %136 = vmatpush2.msra.mxu0 0.0
    %137 = vmatprep.subr.mxu0 0.0
    %138 = vmatpush2.msra.mxu0 0.0
    %139 = vmatprep.subr.mxu0 0.0
    %140 = vmatpush2.msra.mxu0 0.0
    %141 = vmatprep.subr.mxu0 0.0
    %142 = vmatpush2.msra.mxu0 0.0
    %143 = vmatprep.mubr.f32.mxu0 0.0
    %144 = vmatmul.mubr.f32.gmra.mxu0 %v74
    %v145 = vpop.f32.mrf.mxu0
    %v146 = vadd.f32 %v70, %v145
    %v147 = vpop.f32.mrf.mxu0
    %148 = vmatprep.mubr.f32.mxu0 0.0
    %149 = vmatmul.mubr.f32.gmra.mxu0 %v77
    %v150 = vpop.f32.mrf.mxu0
    %v151 = vadd.f32 %v70, %v150
    %v152 = vpop.f32.mrf.mxu0
    %153 = vdwg.mxu0
    %v154 = vld [vmem:[#allocation7] sm:$0xff]
    %v155 = vld [vmem:[#allocation7 + $0x8] sm:$0xff]
    %v156 = vadd.f32 %v154, %v146
    %v157 = vadd.f32 %v155, %v151
    %vm158 = vcmask 130048
    %159 = vst.msk [vmem:[#allocation8] sm:$0xff] %vm158, %v156
    %160 = vst.msk [vmem:[#allocation8 + $0x8] sm:$0xff] %vm158, %v157
    // Predicated region
    $region30: #{a_call__.1} parent=1 // pred_check
      _
    $region31: #{a_call__.1} parent=1 // pred_check_branch
      %162 = sbr.rel (0) target = $region33
    $region32: #{a_call__.1} parent=1 // pred_region
      %s164 = ssub.s32 256, 256
      %165 = vsyncadd [#allocation4], %s164
      %s166 = sshll.u32 [#allocation8], 4
      %s167 = int_to_ptr.vmem [resolvable:$true] %s166
      %172 = dma.vmem_to_hbm [thread:$0]  %s167, 256, %s4, [#allocation4], 128, 128, 8
    $region33: #{a_call__.1} parent=1 // pred_fallthru
      _
    // Predicated region
    $region34: #{a_call__.1} parent=1 // pred_check
      _
    $region35: #{a_call__.1} parent=1 // pred_check_branch
      %174 = sbr.rel (0) target = $region37
    $region36: #{a_call__.1} parent=1 // pred_region
      %175 = dma.done [#allocation4], 256
    $region37: #{a_call__.1} parent=1 // pred_fallthru
      _
    %176 = vsyncpa [#allocation3], 1
    %177 = vsyncpa [#allocation6], 1
    %178 = vsyncpa [#allocation4], 1

</llo_original>
